<compile_context>
chip_gen: v7x
topology: tpu7x:2x2x1
jax: 0.10.0
libtpu: 0.0.40
codegen_flags: <defaults>
</compile_context>

<pallas_src>
import jax
import jax.numpy as jnp
from jax.experimental import pallas as pl
from jax.experimental.pallas import tpu as pltpu


# ---------------- Pallas kernel (whole forward pass, fused) ----------------

def fused_dag_kernel(pt_ref, cp_ref, wk_ref, bl_ref, sel_ref, out_ref):
    """conv1 -> bn1 -> relu1 -> add1 -> pool1 -> fc1, fully fused.

    pt_ref:  (K*K*Cin, N*H*W)       bf16 im2col patches, lanes ordered (dh, dw, n, ho, wo)
    cp_ref:  (Cout, K*K*Cin + 3)    f32  [conv weight | conv bias | bn gamma | bn beta]
    wk_ref:  (Cout, out, Ho*Wo)     f32  fc weight, NOT replicated across batch
    bl_ref:  (out, 1)               f32  fc bias
    sel_ref: (N*Ho*Wo, N)           f32  block-ones per-batch-sum selector
    out_ref: (out, N)               f32  transposed logits (wrapper transposes back)
    """
    kkc, npix = pt_ref.shape
    cout = cp_ref.shape[0]
    hw = wk_ref.shape[2]
    n_batch = out_ref.shape[1]
    nhw = npix // 4                                 # N*Ho*Wo (pool output pixels)

    cp = cp_ref[...]
    wct = cp[:, :kkc].astype(jnp.bfloat16)          # (Cout, K*K*Cin)  bf16 MXU LHS
    conv_b = cp[:, kkc:kkc + 1]                     # (Cout, 1)
    gamma = cp[:, kkc + 1:kkc + 2]                  # (Cout, 1)
    beta = cp[:, kkc + 2:kkc + 3]                   # (Cout, 1)

    # conv1 as a lane-dense bf16 matmul, f32 accumulation: (Cout, 9*Cin) @ (9*Cin, N*H*W).
    # Conv bias is NOT added here: BN's mean subtraction cancels it on this branch.
    conv = jnp.dot(wct, pt_ref[...], preferred_element_type=jnp.float32)   # (Cout, N*H*W) f32

    # bn1 -- BatchNorm2d, training mode, one pass: var = E[x^2] - E[x]^2 (biased),
    # clamped at 0 so f32 cancellation cannot feed a negative number to rsqrt.
    inv_n = 1.0 / npix
    mean = jnp.sum(conv, axis=1, keepdims=True) * inv_n                    # (Cout, 1)
    ex2 = jnp.sum(conv * conv, axis=1, keepdims=True) * inv_n              # (Cout, 1)
    var = jnp.maximum(ex2 - mean * mean, 0.0)
    bn = (conv - mean) * (jax.lax.rsqrt(var + 1e-5) * gamma) + beta

    # relu1 + add1 (skip connection: conv1-with-bias + relu1). All f32 elementwise.
    add1 = (conv + conv_b) + jnp.maximum(bn, 0.0)                          # (Cout, N*H*W)

    # pool1 -- MaxPool2d(2,2): elementwise max of the four (dh, dw) lane blocks.
    pooled = jnp.maximum(
        jnp.maximum(add1[:, 0:nhw], add1[:, nhw:2 * nhw]),
        jnp.maximum(add1[:, 2 * nhw:3 * nhw], add1[:, 3 * nhw:4 * nhw]))   # (Cout, N*Ho*Wo)

    # fc1 -- Flatten((c, ho, wo)) + Linear. Channel contraction on the VPU (short static
    # unroll) against the fc weight broadcast across batch in-register (single lane
    # concat, no HBM replication); the per-batch lane sum is ONE MXU matmul against the
    # block-ones selector (no per-batch XLU reduces, no (out,1) column concat).
    wkb = jnp.concatenate([wk_ref[...]] * n_batch, axis=-1)                # (Cout, out, N*Ho*Wo)
    s1 = pooled[0:1, :] * wkb[0]                                           # (out, N*Ho*Wo)
    for c in range(1, cout):
        s1 = s1 + pooled[c:c + 1, :] * wkb[c]
    out_ref[...] = (jnp.dot(s1, sel_ref[...], preferred_element_type=jnp.float32)
                    + bl_ref[...])                                         # (out, N)


# ---------------- JAX glue ----------------

def _im2col_transposed(x_nchw, k):
    """(N, Cin, H, W) -> (K*K*Cin, N*H*W) bf16 im2col, transposed so the contraction dim
    (K*K*Cin) sits on sublanes and pixels sit densely on lanes. Columns are ordered
    (dh, dw, n, ho, wo) with h = 2*ho+dh, w = 2*wo+dw so each 2x2 pooling window is
    spread across four contiguous lane blocks. Row order is (kh, kw, ci). Cast to bf16
    up front so the (only non-trivially sized) kernel input is half the HBM bytes; with
    allow_input_fusion this whole chain can fuse into the pallas_call input."""
    n, cin, h, w = x_nchw.shape
    ho, wo = h // 2, w // 2
    xp = jnp.pad(x_nchw.astype(jnp.bfloat16), ((0, 0), (0, 0), (1, 1), (1, 1)))  # pad=1
    rows = []
    for kh in range(k):
        for kw in range(k):
            sl = xp[:, :, kh:kh + h, kw:kw + w]                # (N, Cin, H, W)
            sl = sl.reshape(n, cin, ho, 2, wo, 2)              # (n, ci, ho, dh, wo, dw)
            sl = sl.transpose(1, 3, 5, 0, 2, 4)                # (ci, dh, dw, n, ho, wo)
            rows.append(sl.reshape(cin, 4 * n * ho * wo))
    return jnp.concatenate(rows, axis=0)                       # (K*K*Cin, N*H*W)


def prepare_params(params):
    """One-time (hoisted out of the forward) parameter re-layout / packing.
    Batch-size independent: the fc weight is NOT replicated across batch anymore."""
    cout, cin, kh, kw = params["conv_w"].shape
    out_features, in_features = params["fc_w"].shape
    hw = in_features // cout                                   # Ho*Wo

    # conv weight -> (Cout, K*K*Cin), columns ordered (kh, kw, ci) to match im2col rows,
    # packed together with [conv bias | bn gamma | bn beta] into a single small input.
    wct = jnp.transpose(params["conv_w"], (0, 2, 3, 1)).reshape(cout, kh * kw * cin)
    cparams = jnp.concatenate(
        [wct,
         params["conv_b"][:, None],
         params["bn_w"][:, None],
         params["bn_b"][:, None]], axis=1).astype(jnp.float32)           # (Cout, KKC+3)

    # fc weight: torch (out, Cout*Ho*Wo) with flatten order (c, ho, wo)
    #   -> (Cout, out, Ho*Wo); batch broadcast happens inside the kernel.
    wk = params["fc_w"].reshape(out_features, cout, hw).transpose(1, 0, 2).astype(jnp.float32)
    bl = params["fc_b"][:, None].astype(jnp.float32)                     # (out, 1)
    return {"cparams": cparams, "wk": wk, "bl": bl}


def custom_graph_network_forward(x_nchw, prep):
    n, cin, h, w = x_nchw.shape
    k = 3                                           # conv1 kernel_size (node_config)
    out_features = prep["bl"].shape[0]
    cout = prep["cparams"].shape[0]
    hw = prep["wk"].shape[2]                        # Ho*Wo
    nhw = n * hw                                    # N*Ho*Wo

    pt = _im2col_transposed(x_nchw, k)              # (K*K*Cin, N*H*W) bf16
    kkc, npix = pt.shape
    # Block-ones selector for the per-batch lane sum (jit-time constant, ~1 KB).
    sel = jnp.repeat(jnp.eye(n, dtype=jnp.float32), hw, axis=0)          # (N*Ho*Wo, N)

    flops = 2 * cout * kkc * npix + 2 * cout * out_features * nhw + 2 * out_features * nhw * n
    bytes_accessed = (pt.size * pt.dtype.itemsize
                      + prep["cparams"].size * 4 + prep["wk"].size * 4
                      + prep["bl"].size * 4 + sel.size * 4
                      + out_features * n * 4)

    vmem = pl.BlockSpec(memory_space=pltpu.MemorySpace.VMEM)
    out_t = pl.pallas_call(
        fused_dag_kernel,
        out_shape=jax.ShapeDtypeStruct((out_features, n), jnp.float32),
        in_specs=[vmem, vmem, vmem, vmem, vmem],
        out_specs=vmem,
        compiler_params=pltpu.CompilerParams(
            # Let XLA fuse the im2col pad/slice/transpose/concat chain into input 0
            # so pt need not be materialized in HBM.
            allow_input_fusion=[True, False, False, False, False]),
        cost_estimate=pl.CostEstimate(flops=int(flops), transcendentals=int(cout),
                                      bytes_accessed=int(bytes_accessed)),
    )(pt, prep["cparams"], prep["wk"], prep["bl"], sel)
    return out_t.T                                  # (N, out_features)


# ---------------- deterministic parameter init + run ----------------

def init_params(key, cin=4, cout=8, h=16, w=16, out_features=10):
    ho, wo = h // 2, w // 2                         # fc in_features coupled to pooled dims
    k1, k2, k3, k4 = jax.random.split(key, 4)
    return {
        "conv_w": 0.1 * jax.random.normal(k1, (cout, cin, 3, 3), jnp.float32),
        "conv_b": 0.1 * jax.random.normal(k2, (cout,), jnp.float32),
        "bn_w": jnp.ones((cout,), jnp.float32),     # nn.BatchNorm2d default init
        "bn_b": jnp.zeros((cout,), jnp.float32),
        "fc_w": 0.05 * jax.random.normal(k3, (out_features, cout * ho * wo), jnp.float32),
        "fc_b": 0.05 * jax.random.normal(k4, (out_features,), jnp.float32),
    }


if __name__ == "__main__":
    key = jax.random.PRNGKey(0)
    kx, kp = jax.random.split(key)
    N, Cin, H, W = 2, 4, 16, 16
    x = jax.random.normal(kx, (N, Cin, H, W), jnp.float32)     # NCHW, like PyTorch
    params = init_params(kp, cin=Cin, cout=8, h=H, w=W, out_features=10)
    prep = prepare_params(params)                              # hoisted: runs once

    fwd = jax.jit(custom_graph_network_forward)
    out = fwd(x, prep)
    jax.block_until_ready(out)
    assert out.shape == (N, 10) and out.dtype == jnp.float32
    print("KERNEL_OK")
</pallas_src>

<mosaic_0001>
module attributes {stable_mosaic.version = 11 : i64} {
  func.func @fused_dag_kernel(%arg0: memref<36x512xbf16, #tpu.memory_space<vmem>>, %arg1: memref<8x39xf32, #tpu.memory_space<vmem>>, %arg2: memref<8x10x64xf32, #tpu.memory_space<vmem>>, %arg3: memref<10x1xf32, #tpu.memory_space<vmem>>, %arg4: memref<128x2xf32, #tpu.memory_space<vmem>>, %arg5: memref<10x2xf32, #tpu.memory_space<vmem>>) attributes {dimension_semantics = [], scalar_prefetch = 0 : i64, scratch_operands = 0 : i64, tpu.core_type = #tpu.core_type<tc>} {
    %c0 = arith.constant 0 : index
    %c0_0 = arith.constant 0 : index
    %0 = vector.load %arg1[%c0, %c0_0] : memref<8x39xf32, #tpu.memory_space<vmem>>, vector<8x39xf32>
    %1 = vector.extract_strided_slice %0 {offsets = [0, 0], sizes = [8, 36], strides = [1, 1]} : vector<8x39xf32> to vector<8x36xf32>
    %2 = arith.truncf %1 : vector<8x36xf32> to vector<8x36xbf16>
    %3 = vector.extract_strided_slice %0 {offsets = [0, 36], sizes = [8, 1], strides = [1, 1]} : vector<8x39xf32> to vector<8x1xf32>
    %4 = vector.extract_strided_slice %0 {offsets = [0, 37], sizes = [8, 1], strides = [1, 1]} : vector<8x39xf32> to vector<8x1xf32>
    %5 = vector.extract_strided_slice %0 {offsets = [0, 38], sizes = [8, 1], strides = [1, 1]} : vector<8x39xf32> to vector<8x1xf32>
    %c0_1 = arith.constant 0 : index
    %c0_2 = arith.constant 0 : index
    %6 = vector.load %arg0[%c0_1, %c0_2] : memref<36x512xbf16, #tpu.memory_space<vmem>>, vector<36x512xbf16>
    %cst = arith.constant dense<0.000000e+00> : vector<8x512xf32>
    %7 = tpu.matmul %2, %6, %cst {dimension_numbers = #tpu.dot_dimension_numbers<[1], [0], [0], [1], [0, 0, 1, 1], [], []>} : vector<8x36xbf16>, vector<36x512xbf16>, vector<8x512xf32> -> vector<8x512xf32>
    %cst_3 = arith.constant dense<0.000000e+00> : vector<8xf32>
    %8 = vector.multi_reduction <add>, %7, %cst_3 [1] : vector<8x512xf32> to vector<8xf32>
    %9 = vector.shape_cast %8 : vector<8xf32> to vector<8x1xf32>
    %cst_4 = arith.constant 0.001953125 : f32
    %10 = vector.broadcast %cst_4 : f32 to vector<8x1xf32>
    %11 = arith.mulf %9, %10 : vector<8x1xf32>
    %12 = arith.mulf %7, %7 : vector<8x512xf32>
    %cst_5 = arith.constant dense<0.000000e+00> : vector<8xf32>
    %13 = vector.multi_reduction <add>, %12, %cst_5 [1] : vector<8x512xf32> to vector<8xf32>
    %14 = vector.shape_cast %13 : vector<8xf32> to vector<8x1xf32>
    %cst_6 = arith.constant 0.001953125 : f32
    %15 = vector.broadcast %cst_6 : f32 to vector<8x1xf32>
    %16 = arith.mulf %14, %15 : vector<8x1xf32>
    %17 = arith.mulf %11, %11 : vector<8x1xf32>
    %18 = arith.subf %16, %17 : vector<8x1xf32>
    %cst_7 = arith.constant 0.000000e+00 : f32
    %19 = vector.broadcast %cst_7 : f32 to vector<8x1xf32>
    %20 = arith.maximumf %18, %19 : vector<8x1xf32>
    %21 = vector.broadcast %11 : vector<8x1xf32> to vector<8x512xf32>
    %22 = arith.subf %7, %21 : vector<8x512xf32>
    %cst_8 = arith.constant 9.99999974E-6 : f32
    %23 = vector.broadcast %cst_8 : f32 to vector<8x1xf32>
    %24 = arith.addf %20, %23 : vector<8x1xf32>
    %25 = math.rsqrt %24 : vector<8x1xf32>
    %26 = arith.mulf %25, %4 : vector<8x1xf32>
    %27 = vector.broadcast %26 : vector<8x1xf32> to vector<8x512xf32>
    %28 = arith.mulf %22, %27 : vector<8x512xf32>
    %29 = vector.broadcast %5 : vector<8x1xf32> to vector<8x512xf32>
    %30 = arith.addf %28, %29 : vector<8x512xf32>
    %31 = vector.broadcast %3 : vector<8x1xf32> to vector<8x512xf32>
    %32 = arith.addf %7, %31 : vector<8x512xf32>
    %cst_9 = arith.constant 0.000000e+00 : f32
    %33 = vector.broadcast %cst_9 : f32 to vector<8x512xf32>
    %34 = arith.maximumf %30, %33 : vector<8x512xf32>
    %35 = arith.addf %32, %34 : vector<8x512xf32>
    %36 = vector.extract_strided_slice %35 {offsets = [0, 0], sizes = [8, 128], strides = [1, 1]} : vector<8x512xf32> to vector<8x128xf32>
    %37 = vector.extract_strided_slice %35 {offsets = [0, 128], sizes = [8, 128], strides = [1, 1]} : vector<8x512xf32> to vector<8x128xf32>
    %38 = arith.maximumf %36, %37 : vector<8x128xf32>
    %39 = vector.extract_strided_slice %35 {offsets = [0, 256], sizes = [8, 128], strides = [1, 1]} : vector<8x512xf32> to vector<8x128xf32>
    %40 = vector.extract_strided_slice %35 {offsets = [0, 384], sizes = [8, 128], strides = [1, 1]} : vector<8x512xf32> to vector<8x128xf32>
    %41 = arith.maximumf %39, %40 : vector<8x128xf32>
    %42 = arith.maximumf %38, %41 : vector<8x128xf32>
    %c0_10 = arith.constant 0 : index
    %c0_11 = arith.constant 0 : index
    %c0_12 = arith.constant 0 : index
    %43 = vector.load %arg2[%c0_10, %c0_11, %c0_12] : memref<8x10x64xf32, #tpu.memory_space<vmem>>, vector<8x10x64xf32>
    %44 = tpu.concatenate %43, %43 in 2 : vector<8x10x64xf32>, vector<8x10x64xf32> -> vector<8x10x128xf32>
    %45 = vector.extract_strided_slice %42 {offsets = [0, 0], sizes = [1, 128], strides = [1, 1]} : vector<8x128xf32> to vector<1x128xf32>
    %46 = vector.extract_strided_slice %44 {offsets = [0, 0, 0], sizes = [1, 10, 128], strides = [1, 1, 1]} : vector<8x10x128xf32> to vector<1x10x128xf32>
    %47 = vector.shape_cast %46 : vector<1x10x128xf32> to vector<10x128xf32>
    %48 = vector.broadcast %45 : vector<1x128xf32> to vector<10x128xf32>
    %49 = arith.mulf %48, %47 : vector<10x128xf32>
    %50 = vector.extract_strided_slice %42 {offsets = [1, 0], sizes = [1, 128], strides = [1, 1]} : vector<8x128xf32> to vector<1x128xf32>
    %51 = vector.extract_strided_slice %44 {offsets = [1, 0, 0], sizes = [1, 10, 128], strides = [1, 1, 1]} : vector<8x10x128xf32> to vector<1x10x128xf32>
    %52 = vector.shape_cast %51 : vector<1x10x128xf32> to vector<10x128xf32>
    %53 = vector.broadcast %50 : vector<1x128xf32> to vector<10x128xf32>
    %54 = arith.mulf %53, %52 : vector<10x128xf32>
    %55 = arith.addf %49, %54 : vector<10x128xf32>
    %56 = vector.extract_strided_slice %42 {offsets = [2, 0], sizes = [1, 128], strides = [1, 1]} : vector<8x128xf32> to vector<1x128xf32>
    %57 = vector.extract_strided_slice %44 {offsets = [2, 0, 0], sizes = [1, 10, 128], strides = [1, 1, 1]} : vector<8x10x128xf32> to vector<1x10x128xf32>
    %58 = vector.shape_cast %57 : vector<1x10x128xf32> to vector<10x128xf32>
    %59 = vector.broadcast %56 : vector<1x128xf32> to vector<10x128xf32>
    %60 = arith.mulf %59, %58 : vector<10x128xf32>
    %61 = arith.addf %55, %60 : vector<10x128xf32>
    %62 = vector.extract_strided_slice %42 {offsets = [3, 0], sizes = [1, 128], strides = [1, 1]} : vector<8x128xf32> to vector<1x128xf32>
    %63 = vector.extract_strided_slice %44 {offsets = [3, 0, 0], sizes = [1, 10, 128], strides = [1, 1, 1]} : vector<8x10x128xf32> to vector<1x10x128xf32>
    %64 = vector.shape_cast %63 : vector<1x10x128xf32> to vector<10x128xf32>
    %65 = vector.broadcast %62 : vector<1x128xf32> to vector<10x128xf32>
    %66 = arith.mulf %65, %64 : vector<10x128xf32>
    %67 = arith.addf %61, %66 : vector<10x128xf32>
    %68 = vector.extract_strided_slice %42 {offsets = [4, 0], sizes = [1, 128], strides = [1, 1]} : vector<8x128xf32> to vector<1x128xf32>
    %69 = vector.extract_strided_slice %44 {offsets = [4, 0, 0], sizes = [1, 10, 128], strides = [1, 1, 1]} : vector<8x10x128xf32> to vector<1x10x128xf32>
    %70 = vector.shape_cast %69 : vector<1x10x128xf32> to vector<10x128xf32>
    %71 = vector.broadcast %68 : vector<1x128xf32> to vector<10x128xf32>
    %72 = arith.mulf %71, %70 : vector<10x128xf32>
    %73 = arith.addf %67, %72 : vector<10x128xf32>
    %74 = vector.extract_strided_slice %42 {offsets = [5, 0], sizes = [1, 128], strides = [1, 1]} : vector<8x128xf32> to vector<1x128xf32>
    %75 = vector.extract_strided_slice %44 {offsets = [5, 0, 0], sizes = [1, 10, 128], strides = [1, 1, 1]} : vector<8x10x128xf32> to vector<1x10x128xf32>
    %76 = vector.shape_cast %75 : vector<1x10x128xf32> to vector<10x128xf32>
    %77 = vector.broadcast %74 : vector<1x128xf32> to vector<10x128xf32>
    %78 = arith.mulf %77, %76 : vector<10x128xf32>
    %79 = arith.addf %73, %78 : vector<10x128xf32>
    %80 = vector.extract_strided_slice %42 {offsets = [6, 0], sizes = [1, 128], strides = [1, 1]} : vector<8x128xf32> to vector<1x128xf32>
    %81 = vector.extract_strided_slice %44 {offsets = [6, 0, 0], sizes = [1, 10, 128], strides = [1, 1, 1]} : vector<8x10x128xf32> to vector<1x10x128xf32>
    %82 = vector.shape_cast %81 : vector<1x10x128xf32> to vector<10x128xf32>
    %83 = vector.broadcast %80 : vector<1x128xf32> to vector<10x128xf32>
    %84 = arith.mulf %83, %82 : vector<10x128xf32>
    %85 = arith.addf %79, %84 : vector<10x128xf32>
    %86 = vector.extract_strided_slice %42 {offsets = [7, 0], sizes = [1, 128], strides = [1, 1]} : vector<8x128xf32> to vector<1x128xf32>
    %87 = vector.extract_strided_slice %44 {offsets = [7, 0, 0], sizes = [1, 10, 128], strides = [1, 1, 1]} : vector<8x10x128xf32> to vector<1x10x128xf32>
    %88 = vector.shape_cast %87 : vector<1x10x128xf32> to vector<10x128xf32>
    %89 = vector.broadcast %86 : vector<1x128xf32> to vector<10x128xf32>
    %90 = arith.mulf %89, %88 : vector<10x128xf32>
    %91 = arith.addf %85, %90 : vector<10x128xf32>
    %c0_13 = arith.constant 0 : index
    %c0_14 = arith.constant 0 : index
    %92 = vector.load %arg4[%c0_13, %c0_14] : memref<128x2xf32, #tpu.memory_space<vmem>>, vector<128x2xf32>
    %cst_15 = arith.constant dense<0.000000e+00> : vector<10x2xf32>
    %93 = tpu.matmul %91, %92, %cst_15 {dimension_numbers = #tpu.dot_dimension_numbers<[1], [0], [0], [1], [0, 0, 1, 1], [], []>} : vector<10x128xf32>, vector<128x2xf32>, vector<10x2xf32> -> vector<10x2xf32>
    %c0_16 = arith.constant 0 : index
    %c0_17 = arith.constant 0 : index
    %94 = vector.load %arg3[%c0_16, %c0_17] : memref<10x1xf32, #tpu.memory_space<vmem>>, vector<10x1xf32>
    %95 = vector.broadcast %94 : vector<10x1xf32> to vector<10x2xf32>
    %96 = arith.addf %93, %95 : vector<10x2xf32>
    %c0_18 = arith.constant 0 : index
    %c0_19 = arith.constant 0 : index
    %97 = vector.load %arg5[%c0_18, %c0_19] : memref<10x2xf32, #tpu.memory_space<vmem>>, vector<10x2xf32>
    tpu.vector_store %arg5[%c0_18, %c0_19], %96 {strides = array<i32>} : memref<10x2xf32, #tpu.memory_space<vmem>>, vector<10x2xf32>,
    return
  }
}

</mosaic_0001>

<llo_original>
// kernel: custom_graph_network_forward.1
$region0: #{custom_graph_network_forward.1}
  #allocation0 [shape = 'u32[]', space=smem, size = 0x4, offset = 0x4, fixed_abs, tag = 'smem constant byte address 0x4 - core index']
  #allocation1 [shape = 'u32[144,128]{1,0:T(1,128)}', space=vmem, size = 0x12000, scoped, tag = 'internal scratch']
  %s0 = inlined_call_operand.vmem [shape: bf16[36,512], index: 0, kind: input, shape index: {}]
  %s1 = inlined_call_operand.vmem [shape: f32[8,39], index: 1, kind: input, shape index: {}]
  %s2 = inlined_call_operand.vmem [shape: f32[8,10,64], index: 2, kind: input, shape index: {}]
  %s3 = inlined_call_operand.vmem [shape: f32[10,1], index: 3, kind: input, shape index: {}]
  %s4 = inlined_call_operand.vmem [shape: f32[128,2], index: 4, kind: input, shape index: {}]
  %s5 = inlined_call_operand.vmem [shape: f32[10,2], index: 5, kind: output, shape index: {}]
  %s6 = sld [smem:[#allocation0]]
  $region30: #{custom_graph_network_forward.1} parent=0
    _
  %s8 = ssub.s32 1, %s6
  %s9 = scalar_select 0, %s8, %s6
  // Predicated region
  $region2: #{custom_graph_network_forward.1} parent=0 // pred_check
    _
  $region3: #{custom_graph_network_forward.1} parent=0 // pred_check_branch
    %11 = sbr.rel (0) target = $region5
  $region4: #{custom_graph_network_forward.1} parent=0 // pred_region
    _
  $region5: #{custom_graph_network_forward.1} parent=0 // pred_fallthru
    _
  // Predicated region
  $region6: #{custom_graph_network_forward.1} parent=0 // pred_check
    _
  $region7: #{custom_graph_network_forward.1} parent=0 // pred_check_branch
    %13 = sbr.rel (0) target = $region9
  $region8: #{custom_graph_network_forward.1} parent=0 // pred_region
    _
  $region9: #{custom_graph_network_forward.1} parent=0 // pred_fallthru
    _
  // Predicated region
  $region10: #{custom_graph_network_forward.1} parent=0 // pred_check
    _
  $region11: #{custom_graph_network_forward.1} parent=0 // pred_check_branch
    %15 = sbr.rel (0) target = $region13
  $region12: #{custom_graph_network_forward.1} parent=0 // pred_region
    _
  $region13: #{custom_graph_network_forward.1} parent=0 // pred_fallthru
    _
  // Predicated region
  $region14: #{custom_graph_network_forward.1} parent=0 // pred_check
    _
  $region15: #{custom_graph_network_forward.1} parent=0 // pred_check_branch
    %17 = sbr.rel (0) target = $region17
  $region16: #{custom_graph_network_forward.1} parent=0 // pred_region
    _
  $region17: #{custom_graph_network_forward.1} parent=0 // pred_fallthru
    _
  // Predicated region
  $region18: #{custom_graph_network_forward.1} parent=0 // pred_check
    _
  $region19: #{custom_graph_network_forward.1} parent=0 // pred_check_branch
    %19 = sbr.rel (0) target = $region21
  $region20: #{custom_graph_network_forward.1} parent=0 // pred_region
    _
  $region21: #{custom_graph_network_forward.1} parent=0 // pred_fallthru
    _
  %v21 = vld [vmem:[%s1] sm:$0xff]
  %v22 = vpack.c.bf16 %v21, %v21
  %v23 = vld [vmem:[%s0] sm:$0xff]
  %v24 = vld [vmem:[%s0 + $0x8] sm:$0xff]
  %v25 = vld [vmem:[%s0 + $0x10] sm:$0xff]
  %v26 = vld [vmem:[%s0 + $0x18] sm:$0xff]
  %v27 = vld [vmem:[%s0 + $0x20] sm:$0xff]
  %v28 = vld [vmem:[%s0 + $0x28] sm:$0xff]
  %v29 = vld [vmem:[%s0 + $0x30] sm:$0xff]
  %v30 = vld [vmem:[%s0 + $0x38] sm:$0xff]
  %v31 = vld [vmem:[%s0 + $0x40] sm:$0x33]
  %v32 = vld [vmem:[%s0 + $0x48] sm:$0x33]
  %v43 = vunpack.c.l.b16 %v23
  %v44 = vunpack.c.h.b16 %v23
  %v45 = vunpack.c.l.b16 %v24
  %v46 = vunpack.c.h.b16 %v24
  %v47 = vunpack.c.l.b16 %v25
  %v48 = vunpack.c.h.b16 %v25
  %v49 = vunpack.c.l.b16 %v26
  %v50 = vunpack.c.h.b16 %v26
  %v51 = vunpack.c.l.b16 %v27
  %v52 = vunpack.c.h.b16 %v27
  %v53 = vunpack.c.l.b16 %v28
  %v54 = vunpack.c.h.b16 %v28
  %v55 = vunpack.c.l.b16 %v29
  %v56 = vunpack.c.h.b16 %v29
  %v57 = vunpack.c.l.b16 %v30
  %v58 = vunpack.c.h.b16 %v30
  %v59 = vunpack.c.l.b16 %v31
  %v60 = vunpack.c.h.b16 %v31
  %v61 = vunpack.c.l.b16 %v32
  %v62 = vunpack.c.h.b16 %v32
  %v63 = vpack.c.b16 %v47, %v43
  %v64 = vpack.c.b16 %v48, %v44
  %v65 = vpack.c.b16 %v49, %v45
  %v66 = vpack.c.b16 %v50, %v46
  %v67 = vpack.c.b16 %v55, %v51
  %v68 = vpack.c.b16 %v56, %v52
  %v69 = vpack.c.b16 %v57, %v53
  %v70 = vpack.c.b16 %v58, %v54
  %v71 = vpack.c.b16 %v59, %v59
  %v72 = vpack.c.b16 %v60, %v60
  %v73 = vpack.c.b16 %v61, %v61
  %v74 = vpack.c.b16 %v62, %v62
  %vm83 = vcmask 293888
  %v85 = vsel %vm83, %v22, 0
  %vm87 = vcmask 1041408
  %v89 = vsel %vm87, %v71, 0
  %v92 = vsel %vm87, %v72, 0
  %v95 = vsel %vm87, %v73, 0
  %v98 = vsel %vm87, %v74, 0
  %100 = vmatprep.subr.bf16.mxu0 %v64
  %101 = vmatpush1.bf16.msra.mxu0 %v63
  %102 = vmatprep.subr.bf16.mxu0 %v68
  %103 = vmatpush1.bf16.msra.mxu0 %v67
  %104 = vmatprep.subr.bf16.mxu0 %v92
  %105 = vmatpush1.bf16.msra.mxu0 %v89
  %106 = vmatprep.subr.bf16.mxu0 0
  %107 = vmatpush1.bf16.msra.mxu0 0
  %108 = vmatprep.subr.bf16.mxu0 0
  %109 = vmatpush1.bf16.msra.mxu0 0
  %110 = vmatprep.subr.bf16.mxu0 0
  %111 = vmatpush1.bf16.msra.mxu0 0
  %112 = vmatprep.subr.bf16.mxu0 0
  %113 = vmatpush1.bf16.msra.mxu0 0
  %114 = vmatprep.subr.bf16.mxu0 0
  %115 = vmatpush1.bf16.msra.mxu0 0
  %116 = vmatprep.subr.bf16.mxu0 0
  %117 = vmatpush1.bf16.msra.mxu0 0
  %118 = vmatprep.subr.bf16.mxu0 0
  %119 = vmatpush1.bf16.msra.mxu0 0
  %120 = vmatprep.subr.bf16.mxu0 0
  %121 = vmatpush1.bf16.msra.mxu0 0
  %122 = vmatprep.subr.bf16.mxu0 0
  %123 = vmatpush1.bf16.msra.mxu0 0
  %124 = vmatprep.subr.bf16.mxu0 0
  %125 = vmatpush1.bf16.msra.mxu0 0
  %126 = vmatprep.subr.bf16.mxu0 0
  %127 = vmatpush1.bf16.msra.mxu0 0
  %128 = vmatprep.subr.bf16.mxu0 0
  %129 = vmatpush1.bf16.msra.mxu0 0
  %130 = vmatprep.subr.bf16.mxu0 0
  %131 = vmatpush1.bf16.msra.mxu0 0
  %132 = vmatprep.mubr.bf16.mxu0 0
  %133 = vmatmul.mubr.bf16.gmra.mrb[0].mxu0 %v85
  %v134 = vpop.f32.mrb[0].mxu0
  %v135 = vadd.f32 0.0, %v134
  %v136 = vpop.f32.mrb[0].mxu0
  %v137 = vadd.f32 0.0, %v136
  %v138 = vpop.f32.mrb[0].mxu0
  %v139 = vpop.f32.mrb[0].mxu0
  %140 = vdwg.mxu0
  %141 = vmatprep.subr.bf16.mxu0 %v66
  %142 = vmatpush1.bf16.msra.mxu0 %v65
  %143 = vmatprep.subr.bf16.mxu0 %v70
  %144 = vmatpush1.bf16.msra.mxu0 %v69
  %145 = vmatprep.subr.bf16.mxu0 %v98
  %146 = vmatpush1.bf16.msra.mxu0 %v95
  %147 = vmatprep.subr.bf16.mxu0 0
  %148 = vmatpush1.bf16.msra.mxu0 0
  %149 = vmatprep.subr.bf16.mxu0 0
  %150 = vmatpush1.bf16.msra.mxu0 0
  %151 = vmatprep.subr.bf16.mxu0 0
  %152 = vmatpush1.bf16.msra.mxu0 0
  %153 = vmatprep.subr.bf16.mxu0 0
  %154 = vmatpush1.bf16.msra.mxu0 0
  %155 = vmatprep.subr.bf16.mxu0 0
  %156 = vmatpush1.bf16.msra.mxu0 0
  %157 = vmatprep.subr.bf16.mxu0 0
  %158 = vmatpush1.bf16.msra.mxu0 0
  %159 = vmatprep.subr.bf16.mxu0 0
  %160 = vmatpush1.bf16.msra.mxu0 0
  %161 = vmatprep.subr.bf16.mxu0 0
  %162 = vmatpush1.bf16.msra.mxu0 0
  %163 = vmatprep.subr.bf16.mxu0 0
  %164 = vmatpush1.bf16.msra.mxu0 0
  %165 = vmatprep.subr.bf16.mxu0 0
  %166 = vmatpush1.bf16.msra.mxu0 0
  %167 = vmatprep.subr.bf16.mxu0 0
  %168 = vmatpush1.bf16.msra.mxu0 0
  %169 = vmatprep.subr.bf16.mxu0 0
  %170 = vmatpush1.bf16.msra.mxu0 0
  %171 = vmatprep.subr.bf16.mxu0 0
  %172 = vmatpush1.bf16.msra.mxu0 0
  %173 = vmatprep.mubr.bf16.mxu0 0
  %174 = vmatmul.mubr.bf16.gmra.mrb[0].mxu0 %v85
  %v175 = vpop.f32.mrb[0].mxu0
  %v176 = vadd.f32 0.0, %v175
  %v177 = vpop.f32.mrb[0].mxu0
  %v178 = vadd.f32 0.0, %v177
  %v179 = vpop.f32.mrb[0].mxu0
  %v180 = vpop.f32.mrb[0].mxu0
  %181 = vdwg.mxu0
  %v182 = vadd.f32 %v135, %v137
  %v183 = vadd.f32 %v182, %v176
  %v184 = vadd.f32 %v183, %v178
  %185 = vadd.xlane.f32.xlu0 %v184
  %v186 = vpop.xlane.xlu0 %185
  %v187 = vmul.f32 %v186, 0.001953125
  %v188 = vmul.f32 %v135, %v135
  %v189 = vmul.f32 %v137, %v137
  %v190 = vmul.f32 %v176, %v176
  %v191 = vmul.f32 %v178, %v178
  %v192 = vadd.f32 %v188, %v189
  %v193 = vadd.f32 %v192, %v190
  %v194 = vadd.f32 %v193, %v191
  %195 = vadd.xlane.f32.xlu0 %v194
  %v196 = vpop.xlane.xlu0 %195
  %v197 = vmul.f32 %v196, 0.001953125
  %v198 = vmul.f32 %v187, %v187
  %v199 = vsub.f32 %v197, %v198
  %v200 = vmax.f32 %v199, 0.0
  %v201 = vsub.f32 %v135, %v187
  %v202 = vsub.f32 %v137, %v187
  %v203 = vsub.f32 %v176, %v187
  %v204 = vsub.f32 %v178, %v187
  %v205 = vadd.f32 %v200, 1e-05
  %v206 = vrsqrt.pop %v205
  %v207 = vmul.f32 %v206, %v21
  %209 = vset.pattern.permute.xlu0 37
  %210 = vperm.xlu0 %209, %v207
  %v211 = vpop.permute.xlu0 %210
  %v213 = vmul.f32 %v201, %v211
  %v214 = vmul.f32 %v202, %v211
  %v215 = vmul.f32 %v203, %v211
  %v216 = vmul.f32 %v204, %v211
  %218 = vset.pattern.permute.xlu0 38
  %219 = vperm.xlu0 %218, %v21
  %v220 = vpop.permute.xlu0 %219
  %v222 = vadd.f32 %v213, %v220
  %v223 = vadd.f32 %v214, %v220
  %v224 = vadd.f32 %v215, %v220
  %v225 = vadd.f32 %v216, %v220
  %226 = vset.pattern.permute.xlu0 36
  %227 = vperm.xlu0 %226, %v21
  %v228 = vpop.permute.xlu0 %227
  %v230 = vadd.f32 %v135, %v228
  %v231 = vadd.f32 %v137, %v228
  %v232 = vadd.f32 %v176, %v228
  %v233 = vadd.f32 %v178, %v228
  %v234 = vmax.f32 %v222, 0.0
  %v235 = vmax.f32 %v223, 0.0
  %v236 = vmax.f32 %v224, 0.0
  %v237 = vmax.f32 %v225, 0.0
  %v238 = vadd.f32 %v230, %v234
  %v239 = vadd.f32 %v231, %v235
  %v240 = vadd.f32 %v232, %v236
  %v241 = vadd.f32 %v233, %v237
  %v242 = vmax.f32 %v238, %v239
  %v243 = vmax.f32 %v240, %v241
  %v244 = vmax.f32 %v242, %v243
  %v245 = vld [vmem:[%s2] sm:$0xff]
  %v246 = vld [vmem:[%s2 + $0x8] sm:$0x3]
  %v247 = vld [vmem:[%s2 + $0x10] sm:$0xff]
  %v248 = vld [vmem:[%s2 + $0x18] sm:$0x3]
  %v249 = vld [vmem:[%s2 + $0x20] sm:$0xff]
  %v250 = vld [vmem:[%s2 + $0x28] sm:$0x3]
  %v251 = vld [vmem:[%s2 + $0x30] sm:$0xff]
  %v252 = vld [vmem:[%s2 + $0x38] sm:$0x3]
  %v253 = vld [vmem:[%s2 + $0x40] sm:$0xff]
  %v254 = vld [vmem:[%s2 + $0x48] sm:$0x3]
  %v255 = vld [vmem:[%s2 + $0x50] sm:$0xff]
  %v256 = vld [vmem:[%s2 + $0x58] sm:$0x3]
  %v257 = vld [vmem:[%s2 + $0x60] sm:$0xff]
  %v258 = vld [vmem:[%s2 + $0x68] sm:$0x3]
  %v259 = vld [vmem:[%s2 + $0x70] sm:$0xff]
  %v260 = vld [vmem:[%s2 + $0x78] sm:$0x3]
  %277 = vrot.lane.b32.xlu0 %v245, 64
  %v278 = vpop.permute.xlu0 %277
  %279 = vrot.lane.b32.xlu0 %v246, 64
  %v280 = vpop.permute.xlu0 %279
  %281 = vrot.lane.b32.xlu0 %v247, 64
  %v282 = vpop.permute.xlu0 %281
  %283 = vrot.lane.b32.xlu0 %v248, 64
  %v284 = vpop.permute.xlu0 %283
  %285 = vrot.lane.b32.xlu0 %v249, 64
  %v286 = vpop.permute.xlu0 %285
  %287 = vrot.lane.b32.xlu0 %v250, 64
  %v288 = vpop.permute.xlu0 %287
  %289 = vrot.lane.b32.xlu0 %v251, 64
  %v290 = vpop.permute.xlu0 %289
  %291 = vrot.lane.b32.xlu0 %v252, 64
  %v292 = vpop.permute.xlu0 %291
  %293 = vrot.lane.b32.xlu0 %v253, 64
  %v294 = vpop.permute.xlu0 %293
  %295 = vrot.lane.b32.xlu0 %v254, 64
  %v296 = vpop.permute.xlu0 %295
  %297 = vrot.lane.b32.xlu0 %v255, 64
  %v298 = vpop.permute.xlu0 %297
  %299 = vrot.lane.b32.xlu0 %v256, 64
  %v300 = vpop.permute.xlu0 %299
  %301 = vrot.lane.b32.xlu0 %v257, 64
  %v302 = vpop.permute.xlu0 %301
  %303 = vrot.lane.b32.xlu0 %v258, 64
  %v304 = vpop.permute.xlu0 %303
  %305 = vrot.lane.b32.xlu0 %v259, 64
  %v306 = vpop.permute.xlu0 %305
  %307 = vrot.lane.b32.xlu0 %v260, 64
  %v308 = vpop.permute.xlu0 %307
  %vm325 = vcmask 523264
  %v326 = vsel %vm325, %v245, %v278
  %v327 = vsel %vm325, %v246, %v280
  %v328 = vsel %vm325, %v247, %v282
  %v329 = vsel %vm325, %v248, %v284
  %v330 = vsel %vm325, %v249, %v286
  %v331 = vsel %vm325, %v250, %v288
  %v332 = vsel %vm325, %v251, %v290
  %v333 = vsel %vm325, %v252, %v292
  %v334 = vsel %vm325, %v253, %v294
  %v335 = vsel %vm325, %v254, %v296
  %v336 = vsel %vm325, %v255, %v298
  %v337 = vsel %vm325, %v256, %v300
  %v338 = vsel %vm325, %v257, %v302
  %v339 = vsel %vm325, %v258, %v304
  %v340 = vsel %vm325, %v259, %v306
  %v341 = vsel %vm325, %v260, %v308
  %v342 = vlaneseq
  %v343 = vshrl.u32 %v342, 7
  %v344 = vsub.s32 0, %v343
  %v345 = vrot.slane %v244, %v344
  %v346 = vmul.f32 %v345, %v326
  %v347 = vmul.f32 %v345, %v327
  %v348 = vlaneseq
  %v349 = vshrl.u32 %v348, 7
  %v350 = vsub.s32 1, %v349
  %v351 = vrot.slane %v244, %v350
  %v352 = vmul.f32 %v351, %v328
  %v353 = vmul.f32 %v351, %v329
  %v354 = vadd.f32 %v346, %v352
  %v355 = vadd.f32 %v347, %v353
  %v356 = vlaneseq
  %v357 = vshrl.u32 %v356, 7
  %v358 = vsub.s32 2, %v357
  %v359 = vrot.slane %v244, %v358
  %v360 = vmul.f32 %v359, %v330
  %v361 = vmul.f32 %v359, %v331
  %v362 = vadd.f32 %v354, %v360
  %v363 = vadd.f32 %v355, %v361
  %v364 = vlaneseq
  %v365 = vshrl.u32 %v364, 7
  %v366 = vsub.s32 3, %v365
  %v367 = vrot.slane %v244, %v366
  %v368 = vmul.f32 %v367, %v332
  %v369 = vmul.f32 %v367, %v333
  %v370 = vadd.f32 %v362, %v368
  %v371 = vadd.f32 %v363, %v369
  %v372 = vlaneseq
  %v373 = vshrl.u32 %v372, 7
  %v374 = vsub.s32 4, %v373
  %v375 = vrot.slane %v244, %v374
  %v376 = vmul.f32 %v375, %v334
  %v377 = vmul.f32 %v375, %v335
  %v378 = vadd.f32 %v370, %v376
  %v379 = vadd.f32 %v371, %v377
  %v380 = vlaneseq
  %v381 = vshrl.u32 %v380, 7
  %v382 = vsub.s32 5, %v381
  %v383 = vrot.slane %v244, %v382
  %v384 = vmul.f32 %v383, %v336
  %v385 = vmul.f32 %v383, %v337
  %v386 = vadd.f32 %v378, %v384
  %v387 = vadd.f32 %v379, %v385
  %v388 = vlaneseq
  %v389 = vshrl.u32 %v388, 7
  %v390 = vsub.s32 6, %v389
  %v391 = vrot.slane %v244, %v390
  %v392 = vmul.f32 %v391, %v338
  %v393 = vmul.f32 %v391, %v339
  %v394 = vadd.f32 %v386, %v392
  %v395 = vadd.f32 %v387, %v393
  %v396 = vlaneseq
  %v397 = vshrl.u32 %v396, 7
  %v398 = vsub.s32 7, %v397
  %v399 = vrot.slane %v244, %v398
  %v400 = vmul.f32 %v399, %v340
  %v401 = vmul.f32 %v399, %v341
  %v402 = vadd.f32 %v394, %v400
  %v403 = vadd.f32 %v395, %v401
  %v404 = vld [vmem:[%s4] sm:$0xff]
  %v405 = vld [vmem:[%s4 + $0x8] sm:$0xff]
  %v406 = vld [vmem:[%s4 + $0x10] sm:$0xff]
  %v407 = vld [vmem:[%s4 + $0x18] sm:$0xff]
  %v408 = vld [vmem:[%s4 + $0x20] sm:$0xff]
  %v409 = vld [vmem:[%s4 + $0x28] sm:$0xff]
  %v410 = vld [vmem:[%s4 + $0x30] sm:$0xff]
  %v411 = vld [vmem:[%s4 + $0x38] sm:$0xff]
  %v412 = vld [vmem:[%s4 + $0x40] sm:$0xff]
  %v413 = vld [vmem:[%s4 + $0x48] sm:$0xff]
  %v414 = vld [vmem:[%s4 + $0x50] sm:$0xff]
  %v415 = vld [vmem:[%s4 + $0x58] sm:$0xff]
  %v416 = vld [vmem:[%s4 + $0x60] sm:$0xff]
  %v417 = vld [vmem:[%s4 + $0x68] sm:$0xff]
  %v418 = vld [vmem:[%s4 + $0x70] sm:$0xff]
  %v419 = vld [vmem:[%s4 + $0x78] sm:$0xff]
  %v420 = vld [vmem:[%s3] sm:$0xff]
  %v421 = vld [vmem:[%s3 + $0x8] sm:$0x3]
  %423 = vset.pattern.permute.xlu0 0
  %424 = vperm.xlu0 %423, %v420
  %v425 = vpop.permute.xlu0 %424
  %428 = vset.pattern.permute.xlu0 0
  %429 = vperm.xlu0 %428, %v421
  %v430 = vpop.permute.xlu0 %429
  %432 = vmatprep.subr.mxu0 0.0
  %433 = vmatpush1.msra.mxu0 %v404
  %434 = vmatprep.subr.mxu0 0.0
  %435 = vmatpush1.msra.mxu0 %v405
  %436 = vmatprep.subr.mxu0 0.0
  %437 = vmatpush1.msra.mxu0 %v406
  %438 = vmatprep.subr.mxu0 0.0
  %439 = vmatpush1.msra.mxu0 %v407
  %440 = vmatprep.subr.mxu0 0.0
  %441 = vmatpush1.msra.mxu0 %v408
  %442 = vmatprep.subr.mxu0 0.0
  %443 = vmatpush1.msra.mxu0 %v409
  %444 = vmatprep.subr.mxu0 0.0
  %445 = vmatpush1.msra.mxu0 %v410
  %446 = vmatprep.subr.mxu0 0.0
  %447 = vmatpush1.msra.mxu0 %v411
  %448 = vmatprep.subr.mxu0 0.0
  %449 = vmatpush1.msra.mxu0 %v412
  %450 = vmatprep.subr.mxu0 0.0
  %451 = vmatpush1.msra.mxu0 %v413
  %452 = vmatprep.subr.mxu0 0.0
  %453 = vmatpush1.msra.mxu0 %v414
  %454 = vmatprep.subr.mxu0 0.0
  %455 = vmatpush1.msra.mxu0 %v415
  %456 = vmatprep.subr.mxu0 0.0
  %457 = vmatpush1.msra.mxu0 %v416
  %458 = vmatprep.subr.mxu0 0.0
  %459 = vmatpush1.msra.mxu0 %v417
  %460 = vmatprep.subr.mxu0 0.0
  %461 = vmatpush1.msra.mxu0 %v418
  %462 = vmatprep.subr.mxu0 0.0
  %463 = vmatpush1.msra.mxu0 %v419
  %464 = vmatprep.subr.mxu0 0.0
  %465 = vmatpush1.msra.mxu0 0.0
  %466 = vmatprep.subr.mxu0 0.0
  %467 = vmatpush1.msra.mxu0 0.0
  %468 = vmatprep.subr.mxu0 0.0
  %469 = vmatpush1.msra.mxu0 0.0
  %470 = vmatprep.subr.mxu0 0.0
  %471 = vmatpush1.msra.mxu0 0.0
  %472 = vmatprep.subr.mxu0 0.0
  %473 = vmatpush1.msra.mxu0 0.0
  %474 = vmatprep.subr.mxu0 0.0
  %475 = vmatpush1.msra.mxu0 0.0
  %476 = vmatprep.subr.mxu0 0.0
  %477 = vmatpush1.msra.mxu0 0.0
  %478 = vmatprep.subr.mxu0 0.0
  %479 = vmatpush1.msra.mxu0 0.0
  %480 = vmatprep.subr.mxu0 0.0
  %481 = vmatpush1.msra.mxu0 0.0
  %482 = vmatprep.subr.mxu0 0.0
  %483 = vmatpush1.msra.mxu0 0.0
  %484 = vmatprep.subr.mxu0 0.0
  %485 = vmatpush1.msra.mxu0 0.0
  %486 = vmatprep.subr.mxu0 0.0
  %487 = vmatpush1.msra.mxu0 0.0
  %488 = vmatprep.subr.mxu0 0.0
  %489 = vmatpush1.msra.mxu0 0.0
  %490 = vmatprep.subr.mxu0 0.0
  %491 = vmatpush1.msra.mxu0 0.0
  %492 = vmatprep.subr.mxu0 0.0
  %493 = vmatpush1.msra.mxu0 0.0
  %494 = vmatprep.subr.mxu0 0.0
  %495 = vmatpush1.msra.mxu0 0.0
  %496 = vmatprep.mubr.f32.mxu0 0.0
  %497 = vmatmul.mubr.f32.gmra.mrb[0].mxu0 %v402
  %v498 = vpop.f32.mrb[0].mxu0
  %v499 = vadd.f32 %v425, %v498
  %v500 = vpop.f32.mrb[0].mxu0
  %501 = vmatprep.mubr.f32.mxu0 0.0
  %502 = vmatmul.mubr.f32.gmra.mrb[0].mxu0 %v403
  %v503 = vpop.f32.mrb[0].mxu0
  %v504 = vadd.f32 %v430, %v503
  %v505 = vpop.f32.mrb[0].mxu0
  %506 = vdwg.mxu0
  %vm507 = vcmask 15360
  %508 = vst.msk [vmem:[%s5] sm:$0xff] %vm507, %v499
  %vm509 = vcmask 9216
  %510 = vst.msk [vmem:[%s5 + $0x8] sm:$0x3] %vm509, %v504
  // Predicated region
  $region22: #{custom_graph_network_forward.1} parent=0 // pred_check
    _
  $region23: #{custom_graph_network_forward.1} parent=0 // pred_check_branch
    %512 = sbr.rel (0) target = $region25
  $region24: #{custom_graph_network_forward.1} parent=0 // pred_region
    _
  $region25: #{custom_graph_network_forward.1} parent=0 // pred_fallthru
    _
  // Predicated region
  $region26: #{custom_graph_network_forward.1} parent=0 // pred_check
    _
  $region27: #{custom_graph_network_forward.1} parent=0 // pred_check_branch
    %514 = sbr.rel (0) target = $region29
  $region28: #{custom_graph_network_forward.1} parent=0 // pred_region
    _
  $region29: #{custom_graph_network_forward.1} parent=0 // pred_fallthru
    _

</llo_original>
